<compile_context>
chip_gen: v7x
topology: tpu7x:2x2x1
jax: 0.10.0
libtpu: 0.0.40
codegen_flags: <defaults>
</compile_context>

<pallas_src>
import functools

import jax
import jax.numpy as jnp
from jax.experimental import pallas as pl
from jax.experimental.pallas import tpu as pltpu

_MIB = 1024 * 1024


def _default_vmem_limit_bytes():
    """Per-generation scoped-VMEM limit: ~3/4 of physical VMEM, capped at
    96 MiB (v5e/v6e: 128 MiB physical, v7x: 64 MiB per TensorCore)."""
    try:
        cap = int(pltpu.get_tpu_info().vmem_capacity_bytes)
    except Exception:
        cap = 64 * _MIB  # conservative fallback (v7x per-core VMEM)
    return max(32 * _MIB, min((cap * 3) // 4, 96 * _MIB))


def _pick_channel_tile(C, row_bytes, itemsize, budget, max_ct=1024):
    """Channel-tile size ct: a divisor of C that (a) keeps the (ct, HW) input
    block under `budget` bytes (it is double-buffered by the pipeline), (b) is
    a multiple of the dtype's native sublane packing (8 f32 / 16 bf16 /
    32 int8) so DMA and vreg loads stay dense, and (c) keeps the unrolled
    in-kernel group loop short (ct <= max_ct)."""
    sub = max(8, 32 // max(itemsize, 1))
    limit = min(budget // max(row_bytes, 1), max_ct)
    if C <= limit:
        return C
    best = 0
    ct = sub
    while ct < C:
        if C % ct == 0 and ct <= limit:
            best = ct
        ct += sub
    if best:
        return best
    # No sublane-aligned divisor fits the budget: fall back to the smallest
    # sublane-aligned divisor (perf-only), else the whole channel axis.
    ct = sub
    while ct < C:
        if C % ct == 0:
            return ct
        ct += sub
    return C


def _si_block_kernel(w_ref, b_ref, masks_ref, x_ref, o_ref, max_sc, sum_sc,
                     *, HW, W, ct, G):
    """One (batch, channel-tile) grid step.

    w_ref     : (18,) f32 SMEM  -- conv weight (1,2,3,3) flattened (c, ky, kx);
                                   avg-channel taps pre-scaled by 1/C.
    b_ref     : (1,)  f32 SMEM  -- conv bias.
    masks_ref : (4, HW) f32 VMEM -- precomputed {0,1} boundary masks
                                    (left, right, up, down).
    x_ref     : (ct, HW) VMEM   -- channel tile of one batch element.
    o_ref     : (1, HW) VMEM    -- output row, written on the last tile.
    max_sc    : (G, HW) VMEM    -- running channel max (x dtype if bf16).
    sum_sc    : (G, HW) f32 VMEM -- running channel sum.
    """
    k = pl.program_id(1)

    # ---- init accumulators on the first channel tile of each batch elem ----
    @pl.when(k == 0)
    def _():
        max_sc[...] = jnp.full(max_sc.shape, -jnp.inf, dtype=max_sc.dtype)
        sum_sc[...] = jnp.zeros(sum_sc.shape, dtype=sum_sc.dtype)

    # ---- vectorized fused channel reduction (max + sum share each load) ----
    # Fold the (ct, HW) block into (G, HW) accumulators in static G-row slabs
    # so every vmax / vadd operates on full-width vregs.
    for g in range(ct // G):
        xg = x_ref[g * G:(g + 1) * G, :]                 # (G, HW) slab
        max_sc[...] = jnp.maximum(max_sc[...], xg.astype(max_sc.dtype))
        sum_sc[...] = sum_sc[...] + xg.astype(jnp.float32)

    # ---- last tile: 3x3 SAME conv (roll + mask taps) + bias + sigmoid ----
    @pl.when(k == pl.num_programs(1) - 1)
    def _():
        # G -> 1 cross-sublane reductions (XLU), once per batch element.
        mxf = jnp.max(max_sc[...].astype(jnp.float32), axis=0, keepdims=True)
        smf = jnp.sum(sum_sc[...], axis=0, keepdims=True)   # 1/C in the taps

        masks = masks_ref[...]                  # (4, HW) f32 {0, 1}
        m_l = masks[0:1, :]                     # tap dx = -1 valid
        m_r = masks[1:2, :]                     # tap dx = +1 valid
        m_u = masks[2:3, :]                     # tap dy = -1 valid
        m_d = masks[3:4, :]                     # tap dy = +1 valid

        def _roll(p, s):
            return pltpu.roll(p, shift=s % HW, axis=1)

        # Column-shifted pooled channels: 2 lane rolls per channel (XLU slot).
        shifted = []
        for p in (mxf, smf):
            p_m1 = _roll(p, 1) * m_l            # p[j - 1], masked at col 0
            p_p1 = _roll(p, -1) * m_r           # p[j + 1], masked at col W-1
            shifted.append((p_m1, p, p_p1))

        # Per-row (dy) weighted combinations: 18 scalar * vector FMAs.
        t = []
        for dyi in range(3):
            acc = jnp.zeros((1, HW), jnp.float32)
            for c in range(2):
                for dxi in range(3):
                    acc = acc + w_ref[c * 9 + dyi * 3 + dxi] * shifted[c][dxi]
            t.append(acc)

        # Row (dy) shifts: 2 rolls by +-W on the combined rows.
        out = t[1]
        out = out + _roll(t[0], W) * m_u        # contribution from row above
        out = out + _roll(t[2], -W) * m_d       # contribution from row below

        y = jax.nn.sigmoid(out + b_ref[0])
        o_ref[...] = y.astype(o_ref.dtype)


def si_block(x, w, b, *, tile_budget_bytes=4 * _MIB, vmem_limit_bytes=None,
             keep_bf16_max=True):
    """x: (N, C, H, W), w: (1, 2, 3, 3), b: (1,) -> (N, 1, H, W)."""
    N, C, H, W = x.shape
    HW = H * W

    if vmem_limit_bytes is None:
        vmem_limit_bytes = _default_vmem_limit_bytes()

    # Fold the 1/C of the channel mean into the avg-channel conv taps so the
    # kernel only carries a running sum (18-element host-side op).
    scale = jnp.array([1.0, 1.0 / C], jnp.float32).reshape(1, 2, 1, 1)
    w_flat = (w.astype(jnp.float32) * scale).reshape(-1)      # (18,)
    b = b.astype(jnp.float32).reshape(1)

    # Precomputed {0,1} boundary masks (removes per-lane // and % in kernel).
    col = jnp.arange(W, dtype=jnp.int32)
    row = jnp.arange(H, dtype=jnp.int32)
    m_l = jnp.broadcast_to(col >= 1, (H, W))
    m_r = jnp.broadcast_to(col <= W - 2, (H, W))
    m_u = jnp.broadcast_to((row >= 1)[:, None], (H, W))
    m_d = jnp.broadcast_to((row <= H - 2)[:, None], (H, W))
    masks = jnp.stack([m_l, m_r, m_u, m_d], 0).astype(jnp.float32).reshape(4, HW)

    # Lane-dense flattened spatial layout (contiguous reshape, free in XLA).
    x_flat = x.reshape(N, C, HW)

    itemsize = x.dtype.itemsize
    sub = max(8, 32 // max(itemsize, 1))
    ct = _pick_channel_tile(C, HW * itemsize, itemsize, tile_budget_bytes)
    num_k = C // ct
    # Slab height for the in-kernel accumulators (full vregs when possible).
    if ct % sub == 0:
        G = sub
    elif ct % 8 == 0:
        G = 8
    else:
        G = ct

    # bf16 max accumulator keeps vreg/VALU traffic halved on v6e/v7x; set
    # keep_bf16_max=False on v5e (no native bf16 VPU path).
    max_dtype = (jnp.bfloat16 if (x.dtype == jnp.bfloat16 and keep_bf16_max)
                 else jnp.float32)

    kernel = functools.partial(_si_block_kernel, HW=HW, W=W, ct=ct, G=G)

    out_flat = pl.pallas_call(
        kernel,
        out_shape=jax.ShapeDtypeStruct((N, 1, HW), x.dtype),
        grid=(N, num_k),
        in_specs=[
            pl.BlockSpec(memory_space=pltpu.MemorySpace.SMEM),       # conv weights
            pl.BlockSpec(memory_space=pltpu.MemorySpace.SMEM),       # conv bias
            pl.BlockSpec((4, HW), lambda n, k: (0, 0)),              # boundary masks
            # TODO(synk): sweep pipeline_mode=pl.Buffered(3) on v5e if the
            # per-tile DMA is still exposed after the larger-tile change.
            pl.BlockSpec((None, ct, HW), lambda n, k: (n, k, 0)),    # x channel tile
        ],
        out_specs=pl.BlockSpec((None, 1, HW), lambda n, k: (n, 0, 0)),
        scratch_shapes=[
            pltpu.VMEM((G, HW), max_dtype),     # running channel max
            pltpu.VMEM((G, HW), jnp.float32),   # running channel sum
        ],
        compiler_params=pltpu.CompilerParams(
            dimension_semantics=("parallel", "arbitrary"),
            vmem_limit_bytes=int(vmem_limit_bytes),
        ),
    )(w_flat, b, masks, x_flat)

    # TODO(synk): for N==1 on v7x, add a parallel HW-tile axis (1-row halo for
    # the conv) so the second TensorCore gets work at small batch.
    return out_flat.reshape(N, 1, H, W)


def si_block_reference(x, w, b):
    """Plain-JAX reference mirroring the PyTorch forward."""
    max_out = jnp.max(x, axis=1, keepdims=True)
    avg_out = jnp.mean(x, axis=1, keepdims=True)
    pooled = jnp.concatenate([max_out, avg_out], axis=1)
    y = jax.lax.conv_general_dilated(
        pooled, w, window_strides=(1, 1), padding="SAME",
        dimension_numbers=("NCHW", "OIHW", "NCHW"))
    return jax.nn.sigmoid(y + b.reshape(1, 1, 1, 1))


if __name__ == "__main__":
    key = jax.random.PRNGKey(0)
    kx, kw, kb = jax.random.split(key, 3)

    N, C, H, W = 2, 4, 16, 16
    x = jax.random.normal(kx, (N, C, H, W), dtype=jnp.float32)

    # Conv2d(2, 1, k=3): weight (1, 2, 3, 3), bias (1,)
    fan_in = 2 * 3 * 3
    bound = 1.0 / float(fan_in) ** 0.5
    w = jax.random.uniform(kw, (1, 2, 3, 3), jnp.float32, -bound, bound)
    b = jax.random.uniform(kb, (1,), jnp.float32, -bound, bound)

    out = jax.block_until_ready(si_block(x, w, b))
    ref = jax.block_until_ready(si_block_reference(x, w, b))

    assert out.shape == (N, 1, H, W)
    assert jnp.allclose(out, ref, rtol=1e-5, atol=1e-5), "mismatch vs reference"
    print("KERNEL_OK")
</pallas_src>

<mosaic_0001>
module attributes {stable_mosaic.version = 11 : i64} {
  func.func @_si_block_kernel(%arg0: i32, %arg1: i32, %arg2: memref<18xf32, #tpu.memory_space<smem>>, %arg3: memref<1xf32, #tpu.memory_space<smem>>, %arg4: memref<4x256xf32, #tpu.memory_space<vmem>>, %arg5: memref<1x4x256xf32, #tpu.memory_space<vmem>>, %arg6: memref<1x1x256xf32, #tpu.memory_space<vmem>>, %arg7: memref<4x256xf32, #tpu.memory_space<vmem>>, %arg8: memref<4x256xf32, #tpu.memory_space<vmem>>) attributes {dimension_semantics = [#tpu.dimension_semantics<parallel>, #tpu.dimension_semantics<arbitrary>], iteration_bounds = array<i64: 2, 1>, scalar_prefetch = 0 : i64, scratch_operands = 2 : i64, tpu.core_type = #tpu.core_type<tc>, window_params = [{transform_indices = @transform_0, window_bounds = array<i64: 18>}, {transform_indices = @transform_1, window_bounds = array<i64: 1>}, {pipeline_mode = #tpu.pipeline_mode<synchronous>, transform_indices = @transform_2, window_bounds = array<i64: 4, 256>}, {transform_indices = @transform_3, window_bounds = array<i64: 1, 4, 256>}, {transform_indices = @transform_4, window_bounds = array<i64: 1, 1, 256>}]} {
    %c0_i32 = arith.constant 0 : i32
    %0 = arith.cmpi eq, %arg1, %c0_i32 : i32
    %1 = arith.extui %0 : i1 to i32
    %c0_i32_0 = arith.constant 0 : i32
    %2 = arith.cmpi ne, %1, %c0_i32_0 : i32
    scf.if %2 {
      %cst = arith.constant 0xFF800000 : f32
      %14 = vector.broadcast %cst : f32 to vector<4x256xf32>
      %c0_13 = arith.constant 0 : index
      %c0_14 = arith.constant 0 : index
      %15 = vector.load %arg7[%c0_13, %c0_14] : memref<4x256xf32, #tpu.memory_space<vmem>>, vector<4x256xf32>
      tpu.vector_store %arg7[%c0_13, %c0_14], %14 {strides = array<i32>} : memref<4x256xf32, #tpu.memory_space<vmem>>, vector<4x256xf32>,
      %cst_15 = arith.constant 0.000000e+00 : f32
      %16 = vector.broadcast %cst_15 : f32 to vector<4x256xf32>
      %c0_16 = arith.constant 0 : index
      %c0_17 = arith.constant 0 : index
      %17 = vector.load %arg8[%c0_16, %c0_17] : memref<4x256xf32, #tpu.memory_space<vmem>>, vector<4x256xf32>
      tpu.vector_store %arg8[%c0_16, %c0_17], %16 {strides = array<i32>} : memref<4x256xf32, #tpu.memory_space<vmem>>, vector<4x256xf32>,
    } else {
    }
    %c0 = arith.constant 0 : index
    %c0_1 = arith.constant 0 : index
    %c0_2 = arith.constant 0 : index
    %3 = vector.load %arg5[%c0, %c0_1, %c0_2] : memref<1x4x256xf32, #tpu.memory_space<vmem>>, vector<1x4x256xf32>
    %4 = vector.shape_cast %3 : vector<1x4x256xf32> to vector<4x256xf32>
    %c0_3 = arith.constant 0 : index
    %c0_4 = arith.constant 0 : index
    %5 = vector.load %arg7[%c0_3, %c0_4] : memref<4x256xf32, #tpu.memory_space<vmem>>, vector<4x256xf32>
    %6 = arith.maximumf %5, %4 : vector<4x256xf32>
    %c0_5 = arith.constant 0 : index
    %c0_6 = arith.constant 0 : index
    %7 = vector.load %arg7[%c0_5, %c0_6] : memref<4x256xf32, #tpu.memory_space<vmem>>, vector<4x256xf32>
    tpu.vector_store %arg7[%c0_5, %c0_6], %6 {strides = array<i32>} : memref<4x256xf32, #tpu.memory_space<vmem>>, vector<4x256xf32>,
    %c0_7 = arith.constant 0 : index
    %c0_8 = arith.constant 0 : index
    %8 = vector.load %arg8[%c0_7, %c0_8] : memref<4x256xf32, #tpu.memory_space<vmem>>, vector<4x256xf32>
    %9 = arith.addf %8, %4 : vector<4x256xf32>
    %c0_9 = arith.constant 0 : index
    %c0_10 = arith.constant 0 : index
    %10 = vector.load %arg8[%c0_9, %c0_10] : memref<4x256xf32, #tpu.memory_space<vmem>>, vector<4x256xf32>
    tpu.vector_store %arg8[%c0_9, %c0_10], %9 {strides = array<i32>} : memref<4x256xf32, #tpu.memory_space<vmem>>, vector<4x256xf32>,
    %c0_i32_11 = arith.constant 0 : i32
    %11 = arith.cmpi eq, %arg1, %c0_i32_11 : i32
    %12 = arith.extui %11 : i1 to i32
    %c0_i32_12 = arith.constant 0 : i32
    %13 = arith.cmpi ne, %12, %c0_i32_12 : i32
    scf.if %13 {
      %c0_13 = arith.constant 0 : index
      %c0_14 = arith.constant 0 : index
      %14 = vector.load %arg7[%c0_13, %c0_14] : memref<4x256xf32, #tpu.memory_space<vmem>>, vector<4x256xf32>
      %cst = arith.constant dense<0xFF800000> : vector<256xf32>
      %15 = vector.multi_reduction <maximumf>, %14, %cst [0] : vector<4x256xf32> to vector<256xf32>
      %16 = vector.shape_cast %15 : vector<256xf32> to vector<1x256xf32>
      %c0_15 = arith.constant 0 : index
      %c0_16 = arith.constant 0 : index
      %17 = vector.load %arg8[%c0_15, %c0_16] : memref<4x256xf32, #tpu.memory_space<vmem>>, vector<4x256xf32>
      %cst_17 = arith.constant dense<0.000000e+00> : vector<256xf32>
      %18 = vector.multi_reduction <add>, %17, %cst_17 [0] : vector<4x256xf32> to vector<256xf32>
      %19 = vector.shape_cast %18 : vector<256xf32> to vector<1x256xf32>
      %c0_18 = arith.constant 0 : index
      %c0_19 = arith.constant 0 : index
      %20 = vector.load %arg4[%c0_18, %c0_19] : memref<4x256xf32, #tpu.memory_space<vmem>>, vector<4x256xf32>
      %21 = vector.extract_strided_slice %20 {offsets = [0, 0], sizes = [1, 256], strides = [1, 1]} : vector<4x256xf32> to vector<1x256xf32>
      %22 = vector.extract_strided_slice %20 {offsets = [1, 0], sizes = [1, 256], strides = [1, 1]} : vector<4x256xf32> to vector<1x256xf32>
      %23 = vector.extract_strided_slice %20 {offsets = [2, 0], sizes = [1, 256], strides = [1, 1]} : vector<4x256xf32> to vector<1x256xf32>
      %24 = vector.extract_strided_slice %20 {offsets = [3, 0], sizes = [1, 256], strides = [1, 1]} : vector<4x256xf32> to vector<1x256xf32>
      %c1_i32 = arith.constant 1 : i32
      %25 = tpu.dynamic_rotate %16 by %c1_i32 dim 1 : vector<1x256xf32>, i32 -> vector<1x256xf32>
      %26 = arith.mulf %25, %21 : vector<1x256xf32>
      %c255_i32 = arith.constant 255 : i32
      %27 = tpu.dynamic_rotate %16 by %c255_i32 dim 1 : vector<1x256xf32>, i32 -> vector<1x256xf32>
      %28 = arith.mulf %27, %22 : vector<1x256xf32>
      %c1_i32_20 = arith.constant 1 : i32
      %29 = tpu.dynamic_rotate %19 by %c1_i32_20 dim 1 : vector<1x256xf32>, i32 -> vector<1x256xf32>
      %30 = arith.mulf %29, %21 : vector<1x256xf32>
      %c255_i32_21 = arith.constant 255 : i32
      %31 = tpu.dynamic_rotate %19 by %c255_i32_21 dim 1 : vector<1x256xf32>, i32 -> vector<1x256xf32>
      %32 = arith.mulf %31, %22 : vector<1x256xf32>
      %cst_22 = arith.constant 0.000000e+00 : f32
      %33 = vector.broadcast %cst_22 : f32 to vector<1x256xf32>
      %c0_23 = arith.constant 0 : index
      %34 = memref.load %arg2[%c0_23] : memref<18xf32, #tpu.memory_space<smem>>
      %35 = vector.broadcast %34 : f32 to vector<1x256xf32>
      %36 = arith.mulf %35, %26 : vector<1x256xf32>
      %37 = arith.addf %33, %36 : vector<1x256xf32>
      %c1 = arith.constant 1 : index
      %38 = memref.load %arg2[%c1] : memref<18xf32, #tpu.memory_space<smem>>
      %39 = vector.broadcast %38 : f32 to vector<1x256xf32>
      %40 = arith.mulf %39, %16 : vector<1x256xf32>
      %41 = arith.addf %37, %40 : vector<1x256xf32>
      %c2 = arith.constant 2 : index
      %42 = memref.load %arg2[%c2] : memref<18xf32, #tpu.memory_space<smem>>
      %43 = vector.broadcast %42 : f32 to vector<1x256xf32>
      %44 = arith.mulf %43, %28 : vector<1x256xf32>
      %45 = arith.addf %41, %44 : vector<1x256xf32>
      %c9 = arith.constant 9 : index
      %46 = memref.load %arg2[%c9] : memref<18xf32, #tpu.memory_space<smem>>
      %47 = vector.broadcast %46 : f32 to vector<1x256xf32>
      %48 = arith.mulf %47, %30 : vector<1x256xf32>
      %49 = arith.addf %45, %48 : vector<1x256xf32>
      %c10 = arith.constant 10 : index
      %50 = memref.load %arg2[%c10] : memref<18xf32, #tpu.memory_space<smem>>
      %51 = vector.broadcast %50 : f32 to vector<1x256xf32>
      %52 = arith.mulf %51, %19 : vector<1x256xf32>
      %53 = arith.addf %49, %52 : vector<1x256xf32>
      %c11 = arith.constant 11 : index
      %54 = memref.load %arg2[%c11] : memref<18xf32, #tpu.memory_space<smem>>
      %55 = vector.broadcast %54 : f32 to vector<1x256xf32>
      %56 = arith.mulf %55, %32 : vector<1x256xf32>
      %57 = arith.addf %53, %56 : vector<1x256xf32>
      %cst_24 = arith.constant 0.000000e+00 : f32
      %58 = vector.broadcast %cst_24 : f32 to vector<1x256xf32>
      %c3 = arith.constant 3 : index
      %59 = memref.load %arg2[%c3] : memref<18xf32, #tpu.memory_space<smem>>
      %60 = vector.broadcast %59 : f32 to vector<1x256xf32>
      %61 = arith.mulf %60, %26 : vector<1x256xf32>
      %62 = arith.addf %58, %61 : vector<1x256xf32>
      %c4 = arith.constant 4 : index
      %63 = memref.load %arg2[%c4] : memref<18xf32, #tpu.memory_space<smem>>
      %64 = vector.broadcast %63 : f32 to vector<1x256xf32>
      %65 = arith.mulf %64, %16 : vector<1x256xf32>
      %66 = arith.addf %62, %65 : vector<1x256xf32>
      %c5 = arith.constant 5 : index
      %67 = memref.load %arg2[%c5] : memref<18xf32, #tpu.memory_space<smem>>
      %68 = vector.broadcast %67 : f32 to vector<1x256xf32>
      %69 = arith.mulf %68, %28 : vector<1x256xf32>
      %70 = arith.addf %66, %69 : vector<1x256xf32>
      %c12 = arith.constant 12 : index
      %71 = memref.load %arg2[%c12] : memref<18xf32, #tpu.memory_space<smem>>
      %72 = vector.broadcast %71 : f32 to vector<1x256xf32>
      %73 = arith.mulf %72, %30 : vector<1x256xf32>
      %74 = arith.addf %70, %73 : vector<1x256xf32>
      %c13 = arith.constant 13 : index
      %75 = memref.load %arg2[%c13] : memref<18xf32, #tpu.memory_space<smem>>
      %76 = vector.broadcast %75 : f32 to vector<1x256xf32>
      %77 = arith.mulf %76, %19 : vector<1x256xf32>
      %78 = arith.addf %74, %77 : vector<1x256xf32>
      %c14 = arith.constant 14 : index
      %79 = memref.load %arg2[%c14] : memref<18xf32, #tpu.memory_space<smem>>
      %80 = vector.broadcast %79 : f32 to vector<1x256xf32>
      %81 = arith.mulf %80, %32 : vector<1x256xf32>
      %82 = arith.addf %78, %81 : vector<1x256xf32>
      %cst_25 = arith.constant 0.000000e+00 : f32
      %83 = vector.broadcast %cst_25 : f32 to vector<1x256xf32>
      %c6 = arith.constant 6 : index
      %84 = memref.load %arg2[%c6] : memref<18xf32, #tpu.memory_space<smem>>
      %85 = vector.broadcast %84 : f32 to vector<1x256xf32>
      %86 = arith.mulf %85, %26 : vector<1x256xf32>
      %87 = arith.addf %83, %86 : vector<1x256xf32>
      %c7 = arith.constant 7 : index
      %88 = memref.load %arg2[%c7] : memref<18xf32, #tpu.memory_space<smem>>
      %89 = vector.broadcast %88 : f32 to vector<1x256xf32>
      %90 = arith.mulf %89, %16 : vector<1x256xf32>
      %91 = arith.addf %87, %90 : vector<1x256xf32>
      %c8 = arith.constant 8 : index
      %92 = memref.load %arg2[%c8] : memref<18xf32, #tpu.memory_space<smem>>
      %93 = vector.broadcast %92 : f32 to vector<1x256xf32>
      %94 = arith.mulf %93, %28 : vector<1x256xf32>
      %95 = arith.addf %91, %94 : vector<1x256xf32>
      %c15 = arith.constant 15 : index
      %96 = memref.load %arg2[%c15] : memref<18xf32, #tpu.memory_space<smem>>
      %97 = vector.broadcast %96 : f32 to vector<1x256xf32>
      %98 = arith.mulf %97, %30 : vector<1x256xf32>
      %99 = arith.addf %95, %98 : vector<1x256xf32>
      %c16 = arith.constant 16 : index
      %100 = memref.load %arg2[%c16] : memref<18xf32, #tpu.memory_space<smem>>
      %101 = vector.broadcast %100 : f32 to vector<1x256xf32>
      %102 = arith.mulf %101, %19 : vector<1x256xf32>
      %103 = arith.addf %99, %102 : vector<1x256xf32>
      %c17 = arith.constant 17 : index
      %104 = memref.load %arg2[%c17] : memref<18xf32, #tpu.memory_space<smem>>
      %105 = vector.broadcast %104 : f32 to vector<1x256xf32>
      %106 = arith.mulf %105, %32 : vector<1x256xf32>
      %107 = arith.addf %103, %106 : vector<1x256xf32>
      %c16_i32 = arith.constant 16 : i32
      %108 = tpu.dynamic_rotate %57 by %c16_i32 dim 1 : vector<1x256xf32>, i32 -> vector<1x256xf32>
      %109 = arith.mulf %108, %23 : vector<1x256xf32>
      %110 = arith.addf %82, %109 : vector<1x256xf32>
      %c240_i32 = arith.constant 240 : i32
      %111 = tpu.dynamic_rotate %107 by %c240_i32 dim 1 : vector<1x256xf32>, i32 -> vector<1x256xf32>
      %112 = arith.mulf %111, %24 : vector<1x256xf32>
      %113 = arith.addf %110, %112 : vector<1x256xf32>
      %c0_26 = arith.constant 0 : index
      %114 = memref.load %arg3[%c0_26] : memref<1xf32, #tpu.memory_space<smem>>
      %115 = vector.broadcast %114 : f32 to vector<1x256xf32>
      %116 = arith.addf %113, %115 : vector<1x256xf32>
      %117 = arith.negf %116 : vector<1x256xf32>
      %118 = math.exp %117 : vector<1x256xf32>
      %cst_27 = arith.constant 1.000000e+00 : f32
      %119 = vector.broadcast %cst_27 : f32 to vector<1x256xf32>
      %120 = arith.addf %119, %118 : vector<1x256xf32>
      %121 = arith.divf %119, %120 : vector<1x256xf32>
      %c0_28 = arith.constant 0 : index
      %c0_29 = arith.constant 0 : index
      %c0_30 = arith.constant 0 : index
      %122 = vector.load %arg6[%c0_28, %c0_29, %c0_30] : memref<1x1x256xf32, #tpu.memory_space<vmem>>, vector<1x1x256xf32>
      %123 = vector.shape_cast %122 : vector<1x1x256xf32> to vector<1x256xf32>
      %124 = vector.shape_cast %121 : vector<1x256xf32> to vector<1x1x256xf32>
      tpu.vector_store %arg6[%c0_28, %c0_29, %c0_30], %124 {strides = array<i32>} : memref<1x1x256xf32, #tpu.memory_space<vmem>>, vector<1x1x256xf32>,
    } else {
    }
    return
  }
  func.func @transform_0(%arg0: i32, %arg1: i32) -> i32 {
    %c0_i32 = arith.constant 0 : i32
    %c0_i32_0 = arith.constant 0 : i32
    return %c0_i32 : i32
  }
  func.func @transform_1(%arg0: i32, %arg1: i32) -> i32 {
    %c0_i32 = arith.constant 0 : i32
    %c0_i32_0 = arith.constant 0 : i32
    return %c0_i32 : i32
  }
  func.func @transform_2(%arg0: i32, %arg1: i32) -> (i32, i32) {
    %c0_i32 = arith.constant 0 : i32
    %c0_i32_0 = arith.constant 0 : i32
    %c0_i32_1 = arith.constant 0 : i32
    return %c0_i32, %c0_i32_0 : i32, i32
  }
  func.func @transform_3(%arg0: i32, %arg1: i32) -> (i32, i32, i32) {
    %c0_i32 = arith.constant 0 : i32
    %c0_i32_0 = arith.constant 0 : i32
    return %arg0, %arg1, %c0_i32 : i32, i32, i32
  }
  func.func @transform_4(%arg0: i32, %arg1: i32) -> (i32, i32, i32) {
    %c0_i32 = arith.constant 0 : i32
    %c0_i32_0 = arith.constant 0 : i32
    %c0_i32_1 = arith.constant 0 : i32
    return %arg0, %c0_i32, %c0_i32_0 : i32, i32, i32
  }
}

</mosaic_0001>

<llo_original>
// kernel: tpu_custom_call.1
$region0: #{tpu_custom_call.1}
  #allocation0 [shape = 'u32[]', space=smem, size = 0x4, offset = 0x4, fixed_abs, tag = 'smem constant byte address 0x4 - core index']
  #allocation1 [shape = 'u32[144,128]{1,0:T(1,128)}', space=vmem, size = 0x12000, scoped, tag = 'internal scratch']
  #allocation2 [shape = 'f32[4,256]{1,0:T(4,128)}', space=vmem, size = 0x1000, scoped, tag = 'scratch operand']
  #allocation3 [shape = 'f32[4,256]{1,0:T(4,128)}', space=vmem, size = 0x1000, scoped, tag = 'scratch operand']
  #allocation4 [shape = 'f32[1]{0:T(128)S(6)}', space=smem, size = 0x200, scoped, tag = 'scoped memory for tpu_custom_call.1']
  %s0 = inlined_call_operand.vmem [shape: f32[18], index: 0, kind: input, shape index: {}]
  %s1 = inlined_call_operand.<no memory space> [shape: f32[1], index: 1, kind: input, shape index: {}]
  %s2 = inlined_call_operand.hbm [shape: f32[4,256], index: 2, kind: input, shape index: {}]
  %s3 = inlined_call_operand.hbm [shape: f32[2,4,256], index: 3, kind: input, shape index: {}]
  %s4 = inlined_call_operand.hbm [shape: f32[2,1,256], index: 4, kind: output, shape index: {}]
  %s5 = sld [smem:[#allocation0]]
  $region69: #{tpu_custom_call.1} parent=0
    _
  %s7 = ssub.s32 1, %s5
  %s8 = scalar_select 0, %s7, %s5
  %9 = sst [smem:[#allocation4]] %s1
  $region1: #{tpu_custom_call.1} parent=0
    #allocation5 [shape = 'u8[512]{0}', space=smem, size = 0x200, scoped, tag = 'input window, operand 0, single buffered']
    #allocation6 [shape = 's32[2]{0}', space=sflag, size = 0x8, scoped, tag = 'scoped memory for tpu_custom_call.1']
    #allocation7 [shape = 's32[2]{0}', space=sflag, size = 0x8, scoped, tag = 'scoped memory for tpu_custom_call.1']
    #allocation8 [shape = 's32[2]{0}', space=sflag, size = 0x8, scoped, tag = 'scoped memory for tpu_custom_call.1']
    #allocation9 [shape = 'u8[4096]{0}', space=vmem, size = 0x1000, scoped, tag = 'input window, operand 2, single buffered']
    #allocation10 [shape = 'u8[8192]{0}', space=vmem, size = 0x2000, scoped, tag = 'input window, operand 3']
    #allocation11 [shape = 's32[2]{0}', space=sflag, size = 0x8, scoped, tag = 'scoped memory for tpu_custom_call.1']
    #allocation12 [shape = 'u8[2048]{0}', space=vmem, size = 0x800, scoped, tag = 'output window, operand 0']
    %10 = vsyncpa [#allocation8], 0
    %11 = vsyncpa [#allocation6], 0
    %12 = vsyncpa [#allocation11], 0
    %s13 = scalar_lea.sflag [#allocation11], 1
    %14 = vsyncpa %s13, 0
    %15 = vsyncpa [#allocation7], 0
    %s16 = scalar_lea.sflag [#allocation7], 1
    %17 = vsyncpa %s16, 0
    loop: start=0, step=1, limit=4
    $region2: #{tpu_custom_call.1} parent=1 // loop_pre_header
      _
    $region3: #{tpu_custom_call.1} parent=1 // loop_header
      %s19 = sphi 0, %s23
      %p20 = scmp.ge.s32.totalorder %s19, 4
      %s26 = sphi 0, %s38
      %s27 = sphi 0, %s34
      %s28 = sphi 0, %s26
      %s29 = sphi 0, %s27
      %s30 = sphi 0, %s28
      %s31 = sphi 0, %s29
      %s39 = sphi 0, %s39
      %s41 = sphi 0, %s39
      %s42 = sphi 0, %s41
      %s56 = sphi 0, %s42
      %s60 = sphi 0, %s60
      %s62 = sphi 0, %s60
      %s63 = sphi 0, %s62
      %s77 = sphi 0, %s63
      %s81 = sphi 0, %s81
      %s83 = sphi 0, %s81
      %s84 = sphi 0, %s83
      %s98 = sphi 0, %s84
      %s106 = sphi 0, %s108
      %s109 = sphi 0, %s106
      %s110 = sphi 0, %s109
      %s126 = sphi 0, %s110
      %s132 = sphi 0, %s134
      %s135 = sphi 0, %s132
      %s136 = sphi 0, %s135
      %s152 = sphi 0, %s136
    $region4: #{tpu_custom_call.1} parent=1 // loop_header_branch
      %22 = sbr.rel (%p20) target = $region8
    $region5: #{tpu_custom_call.1} parent=1 // loop_body
      %s24 = ssub.s32 %s19, 1
      %s25 = ssub.s32 %s19, 2
      %s32 = sadd.s32 1, %s27
      %p33 = scmp.ge.s32.totalorder %s32, 1
      %s34 = scalar_select %p33, 0, %s32
      %s35 = sadd.s32 1, %s26
      %s36 = scalar_select %p33, %s35, %s26
      %p37 = scmp.ge.s32.totalorder %s36, 2
      %s38 = scalar_select %p37, 0, %s36
      %s40 = sadd.s32 %s39, 1
      %p43 = scmp.eq.s32.totalorder %s19, 1
      %p44 = scmp.ne.s32.totalorder %s39, %s41
      %p45 = scmp.eq.s32.totalorder %s19, 0
      %p46 = por %p44, %p45
      %p47 = scmp.ne.s32.totalorder %s39, %s41
      %p48 = scmp.eq.s32.totalorder %s24, 1
      %p49 = por %p47, %p48
      %p50 = scmp.ne.s32.totalorder %s41, %s42
      %p51 = scmp.eq.s32.totalorder %s24, 0
      %p52 = por %p50, %p51
      %p53 = scmp.ne.s32.totalorder %s41, %s42
      %p54 = scmp.eq.s32.totalorder %s25, 1
      %p55 = por %p53, %p54
      %p57 = scmp.ne.s32.totalorder %s42, %s56
      %p58 = scmp.eq.s32.totalorder %s25, 0
      %p59 = por %p57, %p58
      %s61 = sadd.s32 %s60, 1
      %p64 = scmp.eq.s32.totalorder %s19, 1
      %p65 = scmp.ne.s32.totalorder %s60, %s62
      %p66 = scmp.eq.s32.totalorder %s19, 0
      %p67 = por %p65, %p66
      %p68 = scmp.ne.s32.totalorder %s60, %s62
      %p69 = scmp.eq.s32.totalorder %s24, 1
      %p70 = por %p68, %p69
      %p71 = scmp.ne.s32.totalorder %s62, %s63
      %p72 = scmp.eq.s32.totalorder %s24, 0
      %p73 = por %p71, %p72
      %p74 = scmp.ne.s32.totalorder %s62, %s63
      %p75 = scmp.eq.s32.totalorder %s25, 1
      %p76 = por %p74, %p75
      %p78 = scmp.ne.s32.totalorder %s63, %s77
      %p79 = scmp.eq.s32.totalorder %s25, 0
      %p80 = por %p78, %p79
      %s82 = sadd.s32 %s81, 1
      %p85 = scmp.eq.s32.totalorder %s19, 1
      %p86 = scmp.ne.s32.totalorder %s81, %s83
      %p87 = scmp.eq.s32.totalorder %s19, 0
      %p88 = por %p86, %p87
      %p89 = scmp.ne.s32.totalorder %s81, %s83
      %p90 = scmp.eq.s32.totalorder %s24, 1
      %p91 = por %p89, %p90
      %p92 = scmp.ne.s32.totalorder %s83, %s84
      %p93 = scmp.eq.s32.totalorder %s24, 0
      %p94 = por %p92, %p93
      %p95 = scmp.ne.s32.totalorder %s83, %s84
      %p96 = scmp.eq.s32.totalorder %s25, 1
      %p97 = por %p95, %p96
      %p99 = scmp.ne.s32.totalorder %s84, %s98
      %p100 = scmp.eq.s32.totalorder %s25, 0
      %p101 = por %p99, %p100
      %s102 = ssub.s32 %s26, %s38
      %s103 = ssub.s32 %s27, %s34
      %s104 = sor.u32 %s102, %s103
      %p105 = scmp.eq.s32.totalorder %s104, 0
      %s107 = sadd.s32 %s106, 1
      %s108 = scalar_select %p105, %s106, %s107
      %p111 = pneg %p105
      %p112 = scmp.eq.s32.totalorder %s19, 1
      %p113 = por %p111, %p112
      %p114 = scmp.ne.s32.totalorder %s106, %s109
      %p115 = scmp.eq.s32.totalorder %s19, 0
      %p116 = por %p114, %p115
      %p117 = scmp.ne.s32.totalorder %s106, %s109
      %p118 = scmp.eq.s32.totalorder %s24, 1
      %p119 = por %p117, %p118
      %p120 = scmp.ne.s32.totalorder %s109, %s110
      %p121 = scmp.eq.s32.totalorder %s24, 0
      %p122 = por %p120, %p121
      %p123 = scmp.ne.s32.totalorder %s109, %s110
      %p124 = scmp.eq.s32.totalorder %s25, 1
      %p125 = por %p123, %p124
      %p127 = scmp.ne.s32.totalorder %s110, %s126
      %p128 = scmp.eq.s32.totalorder %s25, 0
      %p129 = por %p127, %p128
      %s130 = ssub.s32 %s26, %s38
      %p131 = scmp.eq.s32.totalorder %s130, 0
      %s133 = sadd.s32 %s132, 1
      %s134 = scalar_select %p131, %s132, %s133
      %p137 = pneg %p131
      %p138 = scmp.eq.s32.totalorder %s19, 1
      %p139 = por %p137, %p138
      %p140 = scmp.ne.s32.totalorder %s132, %s135
      %p141 = scmp.eq.s32.totalorder %s19, 0
      %p142 = por %p140, %p141
      %p143 = scmp.ne.s32.totalorder %s132, %s135
      %p144 = scmp.eq.s32.totalorder %s24, 1
      %p145 = por %p143, %p144
      %p146 = scmp.ne.s32.totalorder %s135, %s136
      %p147 = scmp.eq.s32.totalorder %s24, 0
      %p148 = por %p146, %p147
      %p149 = scmp.ne.s32.totalorder %s135, %s136
      %p150 = scmp.eq.s32.totalorder %s25, 1
      %p151 = por %p149, %p150
      %p153 = scmp.ne.s32.totalorder %s136, %s152
      %p154 = scmp.eq.s32.totalorder %s25, 0
      %p155 = por %p153, %p154
      %p156 = scmp.le.s32.totalorder 1, %s19
      %p157 = scmp.lt.s32.totalorder %s19, 3
      %p158 = pnand %p156, %p157
      %p159 = pneg %p158
      // Predicated region
      $region9: #{tpu_custom_call.1} parent=5 // pred_check
        _
      $region10: #{tpu_custom_call.1} parent=5 // pred_check_branch
        %161 = sbr.rel (%p158) target = $region12
      $region11: #{tpu_custom_call.1} parent=5 // pred_region
        %s162 = ssub.s32 %s19, 1
        // Predicated region
        $region13: #{tpu_custom_call.1} parent=11 // pred_check
          %p163 = pneg %p52
        $region14: #{tpu_custom_call.1} parent=11 // pred_check_branch
          %165 = sbr.rel (%p163) target = $region16
        $region15: #{tpu_custom_call.1} parent=11 // pred_region
          %s167 = ssub.s32 16, 16
          %168 = vsyncadd [#allocation8], %s167
          %s170 = sshll.u32 %s0, 4
          %s171 = int_to_ptr.vmem [resolvable:$true] %s170
          %173 = dma.vmem_to_smem %s171, 16, [#allocation5], [#allocation8]
        $region16: #{tpu_custom_call.1} parent=11 // pred_fallthru
          _
        // Predicated region
        $region17: #{tpu_custom_call.1} parent=11 // pred_check
          %p174 = pneg %p73
        $region18: #{tpu_custom_call.1} parent=11 // pred_check_branch
          %176 = sbr.rel (%p174) target = $region20
        $region19: #{tpu_custom_call.1} parent=11 // pred_region
          _
        $region20: #{tpu_custom_call.1} parent=11 // pred_fallthru
          _
        // Predicated region
        $region21: #{tpu_custom_call.1} parent=11 // pred_check
          %p177 = pneg %p94
        $region22: #{tpu_custom_call.1} parent=11 // pred_check_branch
          %179 = sbr.rel (%p177) target = $region24
        $region23: #{tpu_custom_call.1} parent=11 // pred_region
          %s181 = ssub.s32 128, 128
          %182 = vsyncadd [#allocation6], %s181
          %s184 = sshll.u32 [#allocation9], 4
          %s185 = int_to_ptr.vmem [resolvable:$true] %s184
          %187 = dma.hbm_to_vmem [thread:$0]  %s2, 128, %s185, [#allocation6]
        $region24: #{tpu_custom_call.1} parent=11 // pred_fallthru
          _
      $region12: #{tpu_custom_call.1} parent=5 // pred_fallthru
        _
      %p188 = scmp.lt.s32.totalorder %s19, 2
      // Predicated region
      $region25: #{tpu_custom_call.1} parent=5 // pred_check
        %p189 = pneg %p188
      $region26: #{tpu_custom_call.1} parent=5 // pred_check_branch
        %191 = sbr.rel (%p189) target = $region28
      $region27: #{tpu_custom_call.1} parent=5 // pred_region
        // Predicated region
        $region29: #{tpu_custom_call.1} parent=27 // pred_check
          %p192 = pneg %p116
        $region30: #{tpu_custom_call.1} parent=27 // pred_check_branch
          %194 = sbr.rel (%p192) target = $region32
        $region31: #{tpu_custom_call.1} parent=27 // pred_region
          %s195 = sand.u32 %s106, 1
          %s196 = scalar_lea.sflag [#allocation11], %s195
          %s197 = sand.u32 %s106, 1
          %s198 = smul.addr %s197, 8
          %s199 = scalar_lea.vmem [#allocation10], %s198
          %s201 = ssub.s32 128, 128
          %202 = vsyncadd %s196, %s201
          %s203 = smul.addr %s27, 2
          %s204 = smul.addr %s26, 2
          %s205 = sadd.s32 %s203, %s204
          %s206 = smul.addr %s205, 64
          %s207 = scalar_lea.hbm %s3, %s206
          %s209 = sshll.u32 %s199, 4
          %s210 = int_to_ptr.vmem [resolvable:$true] %s209
          %212 = dma.hbm_to_vmem [thread:$0]  %s207, 128, %s210, %s196
        $region32: #{tpu_custom_call.1} parent=27 // pred_fallthru
          _
      $region28: #{tpu_custom_call.1} parent=5 // pred_fallthru
        _
      %p213 = scmp.le.s32.totalorder 1, %s19
      %p214 = scmp.lt.s32.totalorder %s19, 3
      %p215 = pnand %p213, %p214
      %p216 = pneg %p215
      // Predicated region
      $region33: #{tpu_custom_call.1} parent=5 // pred_check
        _
      $region34: #{tpu_custom_call.1} parent=5 // pred_check_branch
        %218 = sbr.rel (%p215) target = $region36
      $region35: #{tpu_custom_call.1} parent=5 // pred_region
        %s219 = ssub.s32 %s19, 1
        // Predicated region
        $region37: #{tpu_custom_call.1} parent=35 // pred_check
          %p220 = pneg %p52
        $region38: #{tpu_custom_call.1} parent=35 // pred_check_branch
          %222 = sbr.rel (%p220) target = $region40
        $region39: #{tpu_custom_call.1} parent=35 // pred_region
          %223 = dma.done [#allocation8], 16
        $region40: #{tpu_custom_call.1} parent=35 // pred_fallthru
          _
        // Predicated region
        $region41: #{tpu_custom_call.1} parent=35 // pred_check
          %p224 = pneg %p94
        $region42: #{tpu_custom_call.1} parent=35 // pred_check_branch
          %226 = sbr.rel (%p224) target = $region44
        $region43: #{tpu_custom_call.1} parent=35 // pred_region
          %227 = dma.done [#allocation6], 128
        $region44: #{tpu_custom_call.1} parent=35 // pred_fallthru
          _
        %s228 = sand.u32 %s109, 1
        %s229 = scalar_lea.sflag [#allocation11], %s228
        %s230 = sand.u32 %s109, 1
        %s231 = smul.addr %s230, 8
        %s232 = scalar_lea.vmem [#allocation10], %s231
        // Predicated region
        $region45: #{tpu_custom_call.1} parent=35 // pred_check
          %p233 = pneg %p122
        $region46: #{tpu_custom_call.1} parent=35 // pred_check_branch
          %235 = sbr.rel (%p233) target = $region48
        $region47: #{tpu_custom_call.1} parent=35 // pred_region
          %236 = dma.done %s229, 128
        $region48: #{tpu_custom_call.1} parent=35 // pred_fallthru
          _
        %237 = sfence
        %p238 = pneg %p52
        %p239 = pneg %p49
        %p240 = pneg %p73
        %p241 = pneg %p70
        %p242 = pneg %p94
        %p243 = pneg %p91
        %s244 = sand.u32 %s109, 1
        %s245 = scalar_lea.sflag [#allocation11], %s244
        %s246 = sand.u32 %s109, 1
        %s247 = smul.addr %s246, 8
        %s248 = scalar_lea.vmem [#allocation10], %s247
        %p249 = pneg %p122
        %p250 = pneg %p119
        %p251 = pneg %p148
        %p252 = pneg %p145
        %s253 = sand.u32 %s135, 1
        %s254 = scalar_lea.sflag [#allocation7], %s253
        %s255 = sand.u32 %s135, 1
        %s256 = smul.addr %s255, 2
        %s257 = scalar_lea.vmem [#allocation12], %s256
        %p258 = scmp.eq.s32.totalorder %s29, 0
        // Predicated region
        $region49: #{tpu_custom_call.1} parent=35 // pred_check
          %p259 = pneg %p258
        $region50: #{tpu_custom_call.1} parent=35 // pred_check_branch
          %261 = sbr.rel (%p259) target = $region52
        $region51: #{tpu_custom_call.1} parent=35 // pred_region
          %262 = vst [vmem:[#allocation2] sm:$0xff] -inf
          %263 = vst [vmem:[#allocation3] sm:$0xff] 0.0
        $region52: #{tpu_custom_call.1} parent=35 // pred_fallthru
          _
        %v264 = vld [vmem:[%s232] sm:$0xff]
        %v265 = vld [vmem:[#allocation2] sm:$0xff]
        %v266 = vmax.f32 %v265, %v264
        %267 = vst [vmem:[#allocation2] sm:$0xff] %v266
        %v268 = vld [vmem:[#allocation3] sm:$0xff]
        %v269 = vadd.f32 %v268, %v264
        %270 = vst [vmem:[#allocation3] sm:$0xff] %v269
        // Predicated region
        $region53: #{tpu_custom_call.1} parent=35 // pred_check
          %p271 = pneg %p258
        $region54: #{tpu_custom_call.1} parent=35 // pred_check_branch
          %273 = sbr.rel (%p271) target = $region56
        $region55: #{tpu_custom_call.1} parent=35 // pred_region
          %v274 = vld [vmem:[#allocation2] sm:$0xff]
          %v276 = vcombine.high %v274, %v274
          %vm278 = vcmask 1043456
          %v279 = vsel %vm278, %v274, -inf
          %v280 = vrot.slane %v279, 4
          %v281 = vmax.f32 %v279, %v280
          %v282 = vrot.slane %v281, 2
          %v283 = vmax.f32 %v281, %v282
          %v284 = vrot.slane %v283, 1
          %v285 = vmax.f32 %v283, %v284
          %v286 = vsel %vm278, %v276, -inf
          %v287 = vrot.slane %v286, 4
          %v288 = vmax.f32 %v286, %v287
          %v289 = vrot.slane %v288, 2
          %v290 = vmax.f32 %v288, %v289
          %v291 = vrot.slane %v290, 1
          %v292 = vmax.f32 %v290, %v291
          %v293 = vld [vmem:[#allocation3] sm:$0xff]
          %v295 = vcombine.high %v293, %v293
          %v297 = vsel %vm278, %v293, 0.0
          %v298 = vrot.slane %v297, 4
          %v299 = vadd.f32 %v297, %v298
          %v300 = vrot.slane %v299, 2
          %v301 = vadd.f32 %v299, %v300
          %v302 = vrot.slane %v301, 1
          %v303 = vadd.f32 %v301, %v302
          %v304 = vsel %vm278, %v295, 0.0
          %v305 = vrot.slane %v304, 4
          %v306 = vadd.f32 %v304, %v305
          %v307 = vrot.slane %v306, 2
          %v308 = vadd.f32 %v306, %v307
          %v309 = vrot.slane %v308, 1
          %v310 = vadd.f32 %v308, %v309
          %v311 = vld [vmem:[#allocation9] sm:$0xff]
          %312 = vrot.lane.b32.xlu0 %v285, 1
          %v313 = vpop.permute.xlu0 %312
          %314 = vrot.lane.b32.xlu0 %v292, 1
          %v315 = vpop.permute.xlu0 %314
          %v316 = vlaneseq
          %v317 = vand.u32 %v316, 127
          %vm318 = vcmp.lt.s32.totalorder %v317, 1
          %v319 = vsel %vm318, %v313, %v315
          %v320 = vsel %vm318, %v315, %v313
          %v322 = vlaneseq
          %v323 = vshrl.u32 %v322, 7
          %v324 = vsub.s32 0, %v323
          %v325 = vrot.slane %v311, %v324
          %v326 = vlaneseq
          %v327 = vshrl.u32 %v326, 7
          %v328 = vsub.s32 4, %v327
          %v329 = vrot.slane %v311, %v328
          %v332 = vmul.f32 %v320, %v325
          %v333 = vmul.f32 %v319, %v329
          %334 = vrot.lane.b32.xlu0 %v285, 127
          %v335 = vpop.permute.xlu0 %334
          %336 = vrot.lane.b32.xlu0 %v292, 127
          %v337 = vpop.permute.xlu0 %336
          %vm338 = vcmp.lt.s32.totalorder %v317, 127
          %v339 = vsel %vm338, %v335, %v337
          %v340 = vsel %vm338, %v337, %v335
          %v341 = vlaneseq
          %v342 = vshrl.u32 %v341, 7
          %v343 = vsub.s32 1, %v342
          %v344 = vrot.slane %v311, %v343
          %v345 = vlaneseq
          %v346 = vshrl.u32 %v345, 7
          %v347 = vsub.s32 5, %v346
          %v348 = vrot.slane %v311, %v347
          %v351 = vmul.f32 %v339, %v344
          %v352 = vmul.f32 %v340, %v348
          %353 = vrot.lane.b32.xlu0 %v303, 1
          %v354 = vpop.permute.xlu0 %353
          %355 = vrot.lane.b32.xlu0 %v310, 1
          %v356 = vpop.permute.xlu0 %355
          %v357 = vsel %vm318, %v354, %v356
          %v358 = vsel %vm318, %v356, %v354
          %v359 = vmul.f32 %v358, %v325
          %v360 = vmul.f32 %v357, %v329
          %361 = vrot.lane.b32.xlu0 %v303, 127
          %v362 = vpop.permute.xlu0 %361
          %363 = vrot.lane.b32.xlu0 %v310, 127
          %v364 = vpop.permute.xlu0 %363
          %v365 = vsel %vm338, %v362, %v364
          %v366 = vsel %vm338, %v364, %v362
          %v367 = vmul.f32 %v365, %v344
          %v368 = vmul.f32 %v366, %v348
          %s369 = sld [smem:[#allocation5]]
          %v370 = vstv %s369
          %v371 = vmul.f32 %v370, %v332
          %v372 = vmul.f32 %v370, %v333
          %v373 = vadd.f32 %v371, 0.0
          %v374 = vadd.f32 %v372, 0.0
          %s375 = sld [smem:[#allocation5 + $0x1]]
          %v376 = vstv %s375
          %v377 = vmul.f32 %v376, %v285
          %v378 = vmul.f32 %v376, %v292
          %v379 = vadd.f32 %v373, %v377
          %v380 = vadd.f32 %v374, %v378
          %s381 = sld [smem:[#allocation5 + $0x2]]
          %v382 = vstv %s381
          %v383 = vmul.f32 %v382, %v351
          %v384 = vmul.f32 %v382, %v352
          %v385 = vadd.f32 %v379, %v383
          %v386 = vadd.f32 %v380, %v384
          %s387 = sld [smem:[#allocation5 + $0x9]]
          %v388 = vstv %s387
          %v389 = vmul.f32 %v388, %v359
          %v390 = vmul.f32 %v388, %v360
          %v391 = vadd.f32 %v385, %v389
          %v392 = vadd.f32 %v386, %v390
          %s393 = sld [smem:[#allocation5 + $0xa]]
          %v394 = vstv %s393
          %v395 = vmul.f32 %v394, %v303
          %v396 = vmul.f32 %v394, %v310
          %v397 = vadd.f32 %v391, %v395
          %v398 = vadd.f32 %v392, %v396
          %s399 = sld [smem:[#allocation5 + $0xb]]
          %v400 = vstv %s399
          %v401 = vmul.f32 %v400, %v367
          %v402 = vmul.f32 %v400, %v368
          %v403 = vadd.f32 %v397, %v401
          %v404 = vadd.f32 %v398, %v402
          %s405 = sld [smem:[#allocation5 + $0x3]]
          %v406 = vstv %s405
          %v407 = vmul.f32 %v406, %v332
          %v408 = vmul.f32 %v406, %v333
          %v409 = vadd.f32 %v407, 0.0
          %v410 = vadd.f32 %v408, 0.0
          %s411 = sld [smem:[#allocation5 + $0x4]]
          %v412 = vstv %s411
          %v413 = vmul.f32 %v412, %v285
          %v414 = vmul.f32 %v412, %v292
          %v415 = vadd.f32 %v409, %v413
          %v416 = vadd.f32 %v410, %v414
          %s417 = sld [smem:[#allocation5 + $0x5]]
          %v418 = vstv %s417
          %v419 = vmul.f32 %v418, %v351
          %v420 = vmul.f32 %v418, %v352
          %v421 = vadd.f32 %v415, %v419
          %v422 = vadd.f32 %v416, %v420
          %s423 = sld [smem:[#allocation5 + $0xc]]
          %v424 = vstv %s423
          %v425 = vmul.f32 %v424, %v359
          %v426 = vmul.f32 %v424, %v360
          %v427 = vadd.f32 %v421, %v425
          %v428 = vadd.f32 %v422, %v426
          %s429 = sld [smem:[#allocation5 + $0xd]]
          %v430 = vstv %s429
          %v431 = vmul.f32 %v430, %v303
          %v432 = vmul.f32 %v430, %v310
          %v433 = vadd.f32 %v427, %v431
          %v434 = vadd.f32 %v428, %v432
          %s435 = sld [smem:[#allocation5 + $0xe]]
          %v436 = vstv %s435
          %v437 = vmul.f32 %v436, %v367
          %v438 = vmul.f32 %v436, %v368
          %v439 = vadd.f32 %v433, %v437
          %v440 = vadd.f32 %v434, %v438
          %s441 = sld [smem:[#allocation5 + $0x6]]
          %v442 = vstv %s441
          %v443 = vmul.f32 %v442, %v332
          %v444 = vmul.f32 %v442, %v333
          %v445 = vadd.f32 %v443, 0.0
          %v446 = vadd.f32 %v444, 0.0
          %s447 = sld [smem:[#allocation5 + $0x7]]
          %v448 = vstv %s447
          %v449 = vmul.f32 %v448, %v285
          %v450 = vmul.f32 %v448, %v292
          %v451 = vadd.f32 %v445, %v449
          %v452 = vadd.f32 %v446, %v450
          %s453 = sld [smem:[#allocation5 + $0x8]]
          %v454 = vstv %s453
          %v455 = vmul.f32 %v454, %v351
          %v456 = vmul.f32 %v454, %v352
          %v457 = vadd.f32 %v451, %v455
          %v458 = vadd.f32 %v452, %v456
          %s459 = sld [smem:[#allocation5 + $0xf]]
          %v460 = vstv %s459
          %v461 = vmul.f32 %v460, %v359
          %v462 = vmul.f32 %v460, %v360
          %v463 = vadd.f32 %v457, %v461
          %v464 = vadd.f32 %v458, %v462
          %s465 = sld [smem:[#allocation5 + $0x10]]
          %v466 = vstv %s465
          %v467 = vmul.f32 %v466, %v303
          %v468 = vmul.f32 %v466, %v310
          %v469 = vadd.f32 %v463, %v467
          %v470 = vadd.f32 %v464, %v468
          %s471 = sld [smem:[#allocation5 + $0x11]]
          %v472 = vstv %s471
          %v473 = vmul.f32 %v472, %v367
          %v474 = vmul.f32 %v472, %v368
          %v475 = vadd.f32 %v469, %v473
          %v476 = vadd.f32 %v470, %v474
          %477 = vrot.lane.b32.xlu0 %v403, 16
          %v478 = vpop.permute.xlu0 %477
          %479 = vrot.lane.b32.xlu0 %v404, 16
          %v480 = vpop.permute.xlu0 %479
          %vm481 = vcmp.lt.s32.totalorder %v317, 16
          %v482 = vsel %vm481, %v478, %v480
          %v483 = vsel %vm481, %v480, %v478
          %v484 = vlaneseq
          %v485 = vshrl.u32 %v484, 7
          %v486 = vsub.s32 2, %v485
          %v487 = vrot.slane %v311, %v486
          %v488 = vlaneseq
          %v489 = vshrl.u32 %v488, 7
          %v490 = vsub.s32 6, %v489
          %v491 = vrot.slane %v311, %v490
          %v494 = vmul.f32 %v483, %v487
          %v495 = vmul.f32 %v482, %v491
          %v496 = vadd.f32 %v439, %v494
          %v497 = vadd.f32 %v440, %v495
          %498 = vrot.lane.b32.xlu0 %v475, 112
          %v499 = vpop.permute.xlu0 %498
          %500 = vrot.lane.b32.xlu0 %v476, 112
          %v501 = vpop.permute.xlu0 %500
          %vm502 = vcmp.lt.s32.totalorder %v317, 112
          %v503 = vsel %vm502, %v499, %v501
          %v504 = vsel %vm502, %v501, %v499
          %v505 = vlaneseq
          %v506 = vshrl.u32 %v505, 7
          %v507 = vsub.s32 3, %v506
          %v508 = vrot.slane %v311, %v507
          %v509 = vlaneseq
          %v510 = vshrl.u32 %v509, 7
          %v511 = vsub.s32 7, %v510
          %v512 = vrot.slane %v311, %v511
          %v515 = vmul.f32 %v503, %v508
          %v516 = vmul.f32 %v504, %v512
          %v517 = vadd.f32 %v496, %v515
          %v518 = vadd.f32 %v497, %v516
          %s519 = sld [smem:[#allocation4]]
          %v520 = vstv %s519
          %v521 = vadd.f32 %v517, %v520
          %v522 = vadd.f32 %v518, %v520
          %v523 = vxor.u32 %v521, 2147483648
          %v524 = vxor.u32 %v522, 2147483648
          %v525 = vmul.f32 %v523, 1.442695
          %v526 = vpow.pop %v525
          %v527 = vmul.f32 %v524, 1.442695
          %v528 = vpow.pop %v527
          %v529 = vadd.f32 %v526, 1.0
          %v530 = vadd.f32 %v528, 1.0
          %v531 = vrcp.pop %v529
          %v532 = vmul.f32 1.0, %v531
          %v533 = vrcp.pop %v530
          %v534 = vmul.f32 1.0, %v533
          %v537 = vcombine.low %v532, %v534
          %v539 = vunpack.c.l.s4 1966171168
          %v540 = vunpack.c.0.s8 %v539
          %v541 = vlaneseq
          %v542 = vshrl.u32 %v541, 7
          %v543 = vsub.s32 %v540, %v542
          %v544 = vrot.slane %v537, %v543
          %v546 = vunpack.c.l.s4 1966171168
          %v547 = vunpack.c.0.s8 %v546
          %v548 = vlaneseq
          %v549 = vshrl.u32 %v548, 7
          %v550 = vsub.s32 %v547, %v549
          %v551 = vrot.slane %v544, %v550
          %v553 = vlaneseq
          %vm554 = vcmp.ge.s32.totalorder %v553, 0
          %vm555 = vcmp.lt.s32.totalorder %v553, 256
          %vm556 = vmand %vm554, %vm555
          %557 = vst.msk [vmem:[%s257] sm:$0x3] %vm556, %v551
        $region56: #{tpu_custom_call.1} parent=35 // pred_fallthru
          _
        %s558 = sand.u32 %s135, 1
        %s559 = scalar_lea.sflag [#allocation7], %s558
        %s560 = sand.u32 %s135, 1
        %s561 = smul.addr %s560, 2
        %s562 = scalar_lea.vmem [#allocation12], %s561
        // Predicated region
        $region57: #{tpu_custom_call.1} parent=35 // pred_check
          %p563 = pneg %p145
        $region58: #{tpu_custom_call.1} parent=35 // pred_check_branch
          %565 = sbr.rel (%p563) target = $region60
        $region59: #{tpu_custom_call.1} parent=35 // pred_region
          %s567 = ssub.s32 32, 32
          %568 = vsyncadd %s559, %s567
          %s569 = smul.addr %s28, 2
          %s570 = smul.addr %s569, 16
          %s571 = scalar_lea.hbm %s4, %s570
          %s573 = sshll.u32 %s562, 4
          %s574 = int_to_ptr.vmem [resolvable:$true] %s573
          %576 = dma.vmem_to_hbm [thread:$0]  %s574, 32, %s571, %s559
        $region60: #{tpu_custom_call.1} parent=35 // pred_fallthru
          _
      $region36: #{tpu_custom_call.1} parent=5 // pred_fallthru
        _
      %p577 = scmp.le.s32.totalorder 2, %s19
      // Predicated region
      $region61: #{tpu_custom_call.1} parent=5 // pred_check
        %p578 = pneg %p577
      $region62: #{tpu_custom_call.1} parent=5 // pred_check_branch
        %580 = sbr.rel (%p578) target = $region64
      $region63: #{tpu_custom_call.1} parent=5 // pred_region
        %s581 = ssub.s32 %s19, 2
        // Predicated region
        $region65: #{tpu_custom_call.1} parent=63 // pred_check
          %p582 = pneg %p151
        $region66: #{tpu_custom_call.1} parent=63 // pred_check_branch
          %584 = sbr.rel (%p582) target = $region68
        $region67: #{tpu_custom_call.1} parent=63 // pred_region
          %s585 = sand.u32 %s136, 1
          %s586 = scalar_lea.sflag [#allocation7], %s585
          %s587 = sand.u32 %s136, 1
          %s588 = smul.addr %s587, 2
          %s589 = scalar_lea.vmem [#allocation12], %s588
          %590 = dma.done %s586, 32
        $region68: #{tpu_custom_call.1} parent=63 // pred_fallthru
          _
      $region64: #{tpu_custom_call.1} parent=5 // pred_fallthru
        _
    $region6: #{tpu_custom_call.1} parent=1 // loop_footer
      %s23 = sadd.s32 1, %s19
    $region7: #{tpu_custom_call.1} parent=1 // loop_footer_branch
      %18 = sbr.rel target = $region3
    $region8: #{tpu_custom_call.1} parent=1 // loop_exit
      _
    %591 = vsyncpa [#allocation6], 1
    %s592 = scalar_lea.sflag [#allocation6], 1
    %593 = vsyncpa %s592, 1
    %594 = vsyncpa [#allocation11], 1
    %s595 = scalar_lea.sflag [#allocation11], 1
    %596 = vsyncpa %s595, 1
    %597 = vsyncpa [#allocation7], 1
    %s598 = scalar_lea.sflag [#allocation7], 1
    %599 = vsyncpa %s598, 1
    %600 = vsyncpa [#allocation8], 1
    %s601 = scalar_lea.sflag [#allocation8], 1
    %602 = vsyncpa %s601, 1

</llo_original>
